<compile_context>
chip_gen: v7x
topology: tpu7x:2x2x1
jax: 0.10.0
libtpu: 0.0.40
codegen_flags: <defaults>
</compile_context>

<pallas_src>
import jax
import jax.numpy as jnp
from jax.experimental import pallas as pl
from jax.experimental.pallas import tpu as pltpu


# ----------------------------- kernel ---------------------------------------


def anet_kernel(x_ref, w1_ref, b1_ref, w2_ref, b2_ref, o_ref):
    # x_ref: (tm, s_dim); w1_ref: (s_dim, Hp); b1_ref: (1, Hp) f32
    # w2_ref: (Hp, a_dim); b2_ref: (1, a_dim) f32 (scale 2 already folded in)
    h = jnp.dot(x_ref[...], w1_ref[...], preferred_element_type=jnp.float32)
    h = jnp.maximum(h + b1_ref[...], 0.0)            # bias + ReLU in f32 (v5e-safe)
    h = h.astype(w2_ref.dtype)
    y = jnp.dot(h, w2_ref[...], preferred_element_type=jnp.float32)
    y = jnp.maximum(y + b2_ref[...], 0.0)            # trailing *2 folded into w2/b2
    o_ref[...] = y.astype(o_ref.dtype)


# ----------------------------- wrapper ---------------------------------------


def _lane_pad(n):
    """VMEM blocks pad the last (lane) dim to a multiple of 128."""
    return ((n + 127) // 128) * 128


def _vmem_budget_bytes():
    """Per-generation VMEM budget: ~48 MiB on v7x (64 MiB physical), 64 MiB on
    v5e/v6e (128 MiB physical). Also used as the explicit vmem_limit_bytes."""
    try:
        cap = pltpu.get_tpu_info().vmem_capacity_bytes
    except Exception:
        cap = 128 * 1024 * 1024
    return int(min(64 * 1024 * 1024, (cap * 3) // 4))


def _choose_tm(B, s_dim, hp, a_dim, x_itemsize, w_itemsize, out_itemsize, budget):
    """Pick a batch tile from the VMEM budget with lane-padding-aware accounting."""
    if B <= 256:
        return B                                    # single resident block
    if B <= 1024:
        # Two grid steps so the "parallel" batch grid can shard across v7x's 2 TCs.
        return max(8, (((B + 1) // 2 + 7) // 8) * 8)

    # Resident weights + biases (counted double-buffered to be conservative).
    resident = 2 * ((s_dim * hp + hp * a_dim) * w_itemsize + (hp + a_dim) * 4)
    # Per batch row (last dims lane-padded to 128 inside VMEM blocks):
    per_row = (2 * _lane_pad(s_dim) * x_itemsize        # x tile, double-buffered
               + 2 * _lane_pad(a_dim) * out_itemsize    # out tile, double-buffered
               + _lane_pad(hp) * 4)                     # f32 hidden intermediate
    if w_itemsize < 4:
        per_row += _lane_pad(hp) * w_itemsize           # low-precision copy of h
    tm = (budget // 2 - resident) // per_row            # ~50% headroom for compiler scratch
    tm = int(max(512, min(8192, tm)))
    return (tm // 8) * 8


def anet_forward(x, w1p, b1p, w2p, b2p, *, tm=None, out_dtype=jnp.float32):
    """x: (B, s_dim) in its HBM dtype (f32 or bf16 — no wrapper-side cast).
    w1p/b1p/w2p/b2p: outputs of prepare_anet_params (hidden padded, *2 folded).
    Returns (B, a_dim) in out_dtype."""
    B, s_dim = x.shape
    hp = w1p.shape[1]
    a_dim = w2p.shape[1]
    out_dtype = jnp.dtype(out_dtype)
    budget = _vmem_budget_bytes()

    if tm is None:
        tm = _choose_tm(B, s_dim, hp, a_dim, x.dtype.itemsize,
                        w1p.dtype.itemsize, out_dtype.itemsize, budget)
    tm = min(tm, B)
    if tm != B and tm % 8 != 0:
        tm = max(8, (tm // 8) * 8)  # keep second-to-last block dim 8-aligned

    grid = (pl.cdiv(B, tm),)

    return pl.pallas_call(
        anet_kernel,
        out_shape=jax.ShapeDtypeStruct((B, a_dim), out_dtype),
        grid_spec=pltpu.PrefetchScalarGridSpec(
            num_scalar_prefetch=0,
            grid=grid,
            in_specs=[
                pl.BlockSpec((tm, s_dim), lambda i: (i, 0)),     # x: tiled over batch
                pl.BlockSpec((s_dim, hp), lambda i: (0, 0)),     # w1: VMEM-resident
                pl.BlockSpec((1, hp), lambda i: (0, 0)),         # b1: VMEM-resident
                pl.BlockSpec((hp, a_dim), lambda i: (0, 0)),     # w2: VMEM-resident
                pl.BlockSpec((1, a_dim), lambda i: (0, 0)),      # b2: VMEM-resident
            ],
            out_specs=pl.BlockSpec((tm, a_dim), lambda i: (i, 0)),
        ),
        compiler_params=pltpu.CompilerParams(
            dimension_semantics=("parallel",),   # shard batch grid across TCs (v7x)
            vmem_limit_bytes=budget,             # match the tile-sizing budget
        ),
    )(x, w1p, b1p, w2p, b2p)


# ----------------------------- parameters ------------------------------------


def init_anet_params(key, s_dim, a_dim, hidden=50):
    """Mirror ANet.__init__: weights ~ N(0, 0.1); biases keep PyTorch's default
    Linear init U(-1/sqrt(fan_in), 1/sqrt(fan_in)). Stored as (in, out)."""
    k1, k2, k3, k4 = jax.random.split(key, 4)
    w1 = (jax.random.normal(k1, (hidden, s_dim), jnp.float32) * 0.1).T
    b1 = jax.random.uniform(k2, (1, hidden), jnp.float32,
                            -1.0 / jnp.sqrt(s_dim), 1.0 / jnp.sqrt(s_dim))
    w2 = (jax.random.normal(k3, (a_dim, hidden), jnp.float32) * 0.1).T
    b2 = jax.random.uniform(k4, (1, a_dim), jnp.float32,
                            -1.0 / jnp.sqrt(hidden), 1.0 / jnp.sqrt(hidden))
    return w1, b1, w2, b2


def prepare_anet_params(w1, b1, w2, b2, compute_dtype=jnp.float32):
    """One-time kernel-side parameter prep (exact, done at init — not per call):
      * zero-pad the hidden dim to a multiple of 128 (full unmasked MXU passes;
        exact through ReLU since padded units get 0 weight and 0 bias),
      * fold the trailing *2 into the second layer (relu(2z) == 2*relu(z)),
      * cast weights to the compute dtype (biases stay f32)."""
    s_dim, h = w1.shape
    a_dim = w2.shape[1]
    hp = ((h + 127) // 128) * 128
    w1p = jnp.zeros((s_dim, hp), jnp.float32).at[:, :h].set(w1)
    b1p = jnp.zeros((1, hp), jnp.float32).at[:, :h].set(b1)
    w2p = jnp.zeros((hp, a_dim), jnp.float32).at[:h, :].set(w2 * 2.0)
    b2p = (b2 * 2.0).reshape(1, a_dim)
    return (w1p.astype(compute_dtype), b1p, w2p.astype(compute_dtype), b2p)


# ----------------------------- demo / check -----------------------------------


if __name__ == "__main__":
    key = jax.random.PRNGKey(0)
    k_x, k_p, k_x2 = jax.random.split(key, 3)

    s_dim, a_dim = 32, 8
    w1, b1, w2, b2 = init_anet_params(k_p, s_dim, a_dim)

    def reference(x):  # same math as the PyTorch forward
        x = x.astype(jnp.float32)
        return jnp.maximum(jnp.maximum(x @ w1 + b1, 0.0) @ w2 + b2, 0.0) * 2.0

    params_f32 = prepare_anet_params(w1, b1, w2, b2, jnp.float32)

    # 1) f32, tiny batch: single VMEM-resident block (grid of 1).
    x_small = jax.random.normal(k_x, (2, s_dim), jnp.float32)
    out_small = jax.block_until_ready(anet_forward(x_small, *params_f32))
    assert out_small.shape == (2, a_dim)
    assert jnp.allclose(out_small, reference(x_small), atol=1e-5, rtol=1e-5)

    # 2) f32, ragged batch grid (B=70, tm=32 -> 3 steps, last block partial):
    #    exercises clipped writes on the ragged tail (rows are independent, exact).
    x_rag = jax.random.normal(k_x2, (70, s_dim), jnp.float32)
    out_rag = jax.block_until_ready(anet_forward(x_rag, *params_f32, tm=32))
    assert jnp.allclose(out_rag, reference(x_rag), atol=1e-5, rtol=1e-5)

    # 3) bf16 path: x is ALREADY bf16 in HBM (no wrapper cast), bf16 weights,
    #    f32 MXU accumulation + f32 bias/ReLU, bf16 output.
    params_bf16 = prepare_anet_params(w1, b1, w2, b2, jnp.bfloat16)
    x_bf16 = x_rag[:64].astype(jnp.bfloat16)
    out_bf16 = jax.block_until_ready(
        anet_forward(x_bf16, *params_bf16, tm=16, out_dtype=jnp.bfloat16))
    assert out_bf16.dtype == jnp.bfloat16
    assert jnp.allclose(out_bf16.astype(jnp.float32), reference(x_bf16),
                        atol=5e-2, rtol=5e-2)

    print("KERNEL_OK")
</pallas_src>

<mosaic_0001>
module attributes {stable_mosaic.version = 11 : i64} {
  func.func @anet_kernel(%arg0: i32, %arg1: memref<2x32xf32, #tpu.memory_space<vmem>>, %arg2: memref<32x128xf32, #tpu.memory_space<vmem>>, %arg3: memref<1x128xf32, #tpu.memory_space<vmem>>, %arg4: memref<128x8xf32, #tpu.memory_space<vmem>>, %arg5: memref<1x8xf32, #tpu.memory_space<vmem>>, %arg6: memref<2x8xf32, #tpu.memory_space<vmem>>) attributes {dimension_semantics = [#tpu.dimension_semantics<parallel>], iteration_bounds = array<i64: 1>, scalar_prefetch = 0 : i64, scratch_operands = 0 : i64, tpu.core_type = #tpu.core_type<tc>, window_params = [{transform_indices = @transform_0, window_bounds = array<i64: 2, 32>}, {pipeline_mode = #tpu.pipeline_mode<synchronous>, transform_indices = @transform_1, window_bounds = array<i64: 32, 128>}, {pipeline_mode = #tpu.pipeline_mode<synchronous>, transform_indices = @transform_2, window_bounds = array<i64: 1, 128>}, {pipeline_mode = #tpu.pipeline_mode<synchronous>, transform_indices = @transform_3, window_bounds = array<i64: 128, 8>}, {pipeline_mode = #tpu.pipeline_mode<synchronous>, transform_indices = @transform_4, window_bounds = array<i64: 1, 8>}, {transform_indices = @transform_5, window_bounds = array<i64: 2, 8>}]} {
    %c0 = arith.constant 0 : index
    %c0_0 = arith.constant 0 : index
    %0 = vector.load %arg1[%c0, %c0_0] : memref<2x32xf32, #tpu.memory_space<vmem>>, vector<2x32xf32>
    %c0_1 = arith.constant 0 : index
    %c0_2 = arith.constant 0 : index
    %1 = vector.load %arg2[%c0_1, %c0_2] : memref<32x128xf32, #tpu.memory_space<vmem>>, vector<32x128xf32>
    %cst = arith.constant dense<0.000000e+00> : vector<2x128xf32>
    %2 = tpu.matmul %0, %1, %cst {dimension_numbers = #tpu.dot_dimension_numbers<[1], [0], [0], [1], [0, 0, 1, 1], [], []>} : vector<2x32xf32>, vector<32x128xf32>, vector<2x128xf32> -> vector<2x128xf32>
    %c0_3 = arith.constant 0 : index
    %c0_4 = arith.constant 0 : index
    %3 = vector.load %arg3[%c0_3, %c0_4] : memref<1x128xf32, #tpu.memory_space<vmem>>, vector<1x128xf32>
    %4 = vector.broadcast %3 : vector<1x128xf32> to vector<2x128xf32>
    %5 = arith.addf %2, %4 : vector<2x128xf32>
    %cst_5 = arith.constant 0.000000e+00 : f32
    %6 = vector.broadcast %cst_5 : f32 to vector<2x128xf32>
    %7 = arith.maximumf %5, %6 : vector<2x128xf32>
    %c0_6 = arith.constant 0 : index
    %c0_7 = arith.constant 0 : index
    %8 = vector.load %arg4[%c0_6, %c0_7] : memref<128x8xf32, #tpu.memory_space<vmem>>, vector<128x8xf32>
    %cst_8 = arith.constant dense<0.000000e+00> : vector<2x8xf32>
    %9 = tpu.matmul %7, %8, %cst_8 {dimension_numbers = #tpu.dot_dimension_numbers<[1], [0], [0], [1], [0, 0, 1, 1], [], []>} : vector<2x128xf32>, vector<128x8xf32>, vector<2x8xf32> -> vector<2x8xf32>
    %c0_9 = arith.constant 0 : index
    %c0_10 = arith.constant 0 : index
    %10 = vector.load %arg5[%c0_9, %c0_10] : memref<1x8xf32, #tpu.memory_space<vmem>>, vector<1x8xf32>
    %11 = vector.broadcast %10 : vector<1x8xf32> to vector<2x8xf32>
    %12 = arith.addf %9, %11 : vector<2x8xf32>
    %cst_11 = arith.constant 0.000000e+00 : f32
    %13 = vector.broadcast %cst_11 : f32 to vector<2x8xf32>
    %14 = arith.maximumf %12, %13 : vector<2x8xf32>
    %c0_12 = arith.constant 0 : index
    %c0_13 = arith.constant 0 : index
    %15 = vector.load %arg6[%c0_12, %c0_13] : memref<2x8xf32, #tpu.memory_space<vmem>>, vector<2x8xf32>
    tpu.vector_store %arg6[%c0_12, %c0_13], %14 {strides = array<i32>} : memref<2x8xf32, #tpu.memory_space<vmem>>, vector<2x8xf32>,
    return
  }
  func.func @transform_0(%arg0: i32) -> (i32, i32) {
    %c0_i32 = arith.constant 0 : i32
    %c0_i32_0 = arith.constant 0 : i32
    return %arg0, %c0_i32 : i32, i32
  }
  func.func @transform_1(%arg0: i32) -> (i32, i32) {
    %c0_i32 = arith.constant 0 : i32
    %c0_i32_0 = arith.constant 0 : i32
    %c0_i32_1 = arith.constant 0 : i32
    return %c0_i32, %c0_i32_0 : i32, i32
  }
  func.func @transform_2(%arg0: i32) -> (i32, i32) {
    %c0_i32 = arith.constant 0 : i32
    %c0_i32_0 = arith.constant 0 : i32
    %c0_i32_1 = arith.constant 0 : i32
    return %c0_i32, %c0_i32_0 : i32, i32
  }
  func.func @transform_3(%arg0: i32) -> (i32, i32) {
    %c0_i32 = arith.constant 0 : i32
    %c0_i32_0 = arith.constant 0 : i32
    %c0_i32_1 = arith.constant 0 : i32
    return %c0_i32, %c0_i32_0 : i32, i32
  }
  func.func @transform_4(%arg0: i32) -> (i32, i32) {
    %c0_i32 = arith.constant 0 : i32
    %c0_i32_0 = arith.constant 0 : i32
    %c0_i32_1 = arith.constant 0 : i32
    return %c0_i32, %c0_i32_0 : i32, i32
  }
  func.func @transform_5(%arg0: i32) -> (i32, i32) {
    %c0_i32 = arith.constant 0 : i32
    %c0_i32_0 = arith.constant 0 : i32
    return %arg0, %c0_i32 : i32, i32
  }
}

</mosaic_0001>

<llo_original>
// kernel: tpu_custom_call.1
$region0: #{tpu_custom_call.1}
  #allocation0 [shape = 'u32[]', space=smem, size = 0x4, offset = 0x4, fixed_abs, tag = 'smem constant byte address 0x4 - core index']
  #allocation1 [shape = 'u32[144,128]{1,0:T(1,128)}', space=vmem, size = 0x12000, scoped, tag = 'internal scratch']
  %s0 = inlined_call_operand.hbm [shape: f32[2,32], index: 0, kind: input, shape index: {}]
  %s1 = inlined_call_operand.hbm [shape: f32[32,128], index: 1, kind: input, shape index: {}]
  %s2 = inlined_call_operand.hbm [shape: f32[1,128], index: 2, kind: input, shape index: {}]
  %s3 = inlined_call_operand.hbm [shape: f32[128,8], index: 3, kind: input, shape index: {}]
  %s4 = inlined_call_operand.hbm [shape: f32[1,8], index: 4, kind: input, shape index: {}]
  %s5 = inlined_call_operand.hbm [shape: f32[2,8], index: 5, kind: output, shape index: {}]
  %s6 = sld [smem:[#allocation0]]
  $region50: #{tpu_custom_call.1} parent=0
    _
  %s8 = ssub.s32 1, %s6
  %s9 = scalar_select 0, %s8, %s6
  $region1: #{tpu_custom_call.1} parent=0
    #allocation2 [shape = 'u8[1024]{0}', space=vmem, size = 0x400, scoped, tag = 'input window, operand 0, single buffered']
    #allocation3 [shape = 's32[1]{0}', space=sflag, size = 0x4, scoped, tag = 'scoped memory for tpu_custom_call.1']
    #allocation4 [shape = 's32[1]{0}', space=sflag, size = 0x4, scoped, tag = 'scoped memory for tpu_custom_call.1']
    #allocation5 [shape = 'u8[16384]{0}', space=vmem, size = 0x4000, scoped, tag = 'input window, operand 1, single buffered']
    #allocation6 [shape = 's32[1]{0}', space=sflag, size = 0x4, scoped, tag = 'scoped memory for tpu_custom_call.1']
    #allocation7 [shape = 'u8[512]{0}', space=vmem, size = 0x400, scoped, tag = 'input window, operand 2, single buffered']
    #allocation8 [shape = 'u8[65536]{0}', space=vmem, size = 0x10000, scoped, tag = 'input window, operand 3, single buffered']
    #allocation9 [shape = 's32[1]{0}', space=sflag, size = 0x4, scoped, tag = 'scoped memory for tpu_custom_call.1']
    #allocation10 [shape = 'u8[512]{0}', space=vmem, size = 0x400, scoped, tag = 'input window, operand 4, single buffered']
    #allocation11 [shape = 'u8[1024]{0}', space=vmem, size = 0x400, scoped, tag = 'output window, operand 0, single buffered']
    %10 = vsyncpa [#allocation3], 0
    %11 = vsyncpa [#allocation6], 0
    %12 = vsyncpa [#allocation9], 0
    %13 = vsyncpa [#allocation4], 0
    // Predicated region
    $region2: #{tpu_custom_call.1} parent=1 // pred_check
      _
    $region3: #{tpu_custom_call.1} parent=1 // pred_check_branch
      %15 = sbr.rel (0) target = $region5
    $region4: #{tpu_custom_call.1} parent=1 // pred_region
      %s17 = ssub.s32 32, 32
      %18 = vsyncadd [#allocation3], %s17
      %s20 = sshll.u32 [#allocation2], 4
      %s21 = int_to_ptr.vmem [resolvable:$true] %s20
      %23 = dma.hbm_to_vmem [thread:$0]  %s0, 32, %s21, [#allocation3]
    $region5: #{tpu_custom_call.1} parent=1 // pred_fallthru
      _
    // Predicated region
    $region6: #{tpu_custom_call.1} parent=1 // pred_check
      _
    $region7: #{tpu_custom_call.1} parent=1 // pred_check_branch
      %25 = sbr.rel (0) target = $region9
    $region8: #{tpu_custom_call.1} parent=1 // pred_region
      %s27 = ssub.s32 512, 512
      %28 = vsyncadd [#allocation6], %s27
      %s29 = sshll.u32 [#allocation5], 4
      %s30 = int_to_ptr.vmem [resolvable:$true] %s29
      %35 = dma.hbm_to_vmem [thread:$0]  %s1, 512, %s30, [#allocation6], 128, 128, 8
    $region9: #{tpu_custom_call.1} parent=1 // pred_fallthru
      _
    // Predicated region
    $region10: #{tpu_custom_call.1} parent=1 // pred_check
      _
    $region11: #{tpu_custom_call.1} parent=1 // pred_check_branch
      %37 = sbr.rel (0) target = $region13
    $region12: #{tpu_custom_call.1} parent=1 // pred_region
      %s39 = ssub.s32 16, 16
      %40 = vsyncadd [#allocation6], %s39
      %s42 = sshll.u32 [#allocation7], 4
      %s43 = int_to_ptr.vmem [resolvable:$true] %s42
      %45 = dma.hbm_to_vmem [thread:$0]  %s2, 16, %s43, [#allocation6]
    $region13: #{tpu_custom_call.1} parent=1 // pred_fallthru
      _
    // Predicated region
    $region14: #{tpu_custom_call.1} parent=1 // pred_check
      _
    $region15: #{tpu_custom_call.1} parent=1 // pred_check_branch
      %47 = sbr.rel (0) target = $region17
    $region16: #{tpu_custom_call.1} parent=1 // pred_region
      %s49 = ssub.s32 2048, 2048
      %50 = vsyncadd [#allocation9], %s49
      %s51 = sshll.u32 [#allocation8], 4
      %s52 = int_to_ptr.vmem [resolvable:$true] %s51
      %57 = dma.hbm_to_vmem [thread:$0]  %s3, 2048, %s52, [#allocation9], 128, 128, 8
    $region17: #{tpu_custom_call.1} parent=1 // pred_fallthru
      _
    // Predicated region
    $region18: #{tpu_custom_call.1} parent=1 // pred_check
      _
    $region19: #{tpu_custom_call.1} parent=1 // pred_check_branch
      %59 = sbr.rel (0) target = $region21
    $region20: #{tpu_custom_call.1} parent=1 // pred_region
      %s61 = ssub.s32 16, 16
      %62 = vsyncadd [#allocation9], %s61
      %s64 = sshll.u32 [#allocation10], 4
      %s65 = int_to_ptr.vmem [resolvable:$true] %s64
      %67 = dma.hbm_to_vmem [thread:$0]  %s4, 16, %s65, [#allocation9]
    $region21: #{tpu_custom_call.1} parent=1 // pred_fallthru
      _
    // Predicated region
    $region22: #{tpu_custom_call.1} parent=1 // pred_check
      _
    $region23: #{tpu_custom_call.1} parent=1 // pred_check_branch
      %69 = sbr.rel (0) target = $region25
    $region24: #{tpu_custom_call.1} parent=1 // pred_region
      %70 = dma.done [#allocation3], 32
    $region25: #{tpu_custom_call.1} parent=1 // pred_fallthru
      _
    // Predicated region
    $region26: #{tpu_custom_call.1} parent=1 // pred_check
      _
    $region27: #{tpu_custom_call.1} parent=1 // pred_check_branch
      %72 = sbr.rel (0) target = $region29
    $region28: #{tpu_custom_call.1} parent=1 // pred_region
      %73 = dma.done [#allocation6], 512
    $region29: #{tpu_custom_call.1} parent=1 // pred_fallthru
      _
    // Predicated region
    $region30: #{tpu_custom_call.1} parent=1 // pred_check
      _
    $region31: #{tpu_custom_call.1} parent=1 // pred_check_branch
      %75 = sbr.rel (0) target = $region33
    $region32: #{tpu_custom_call.1} parent=1 // pred_region
      %76 = dma.done [#allocation6], 16
    $region33: #{tpu_custom_call.1} parent=1 // pred_fallthru
      _
    // Predicated region
    $region34: #{tpu_custom_call.1} parent=1 // pred_check
      _
    $region35: #{tpu_custom_call.1} parent=1 // pred_check_branch
      %78 = sbr.rel (0) target = $region37
    $region36: #{tpu_custom_call.1} parent=1 // pred_region
      %79 = dma.done [#allocation9], 2048
    $region37: #{tpu_custom_call.1} parent=1 // pred_fallthru
      _
    // Predicated region
    $region38: #{tpu_custom_call.1} parent=1 // pred_check
      _
    $region39: #{tpu_custom_call.1} parent=1 // pred_check_branch
      %81 = sbr.rel (0) target = $region41
    $region40: #{tpu_custom_call.1} parent=1 // pred_region
      %82 = dma.done [#allocation9], 16
    $region41: #{tpu_custom_call.1} parent=1 // pred_fallthru
      _
    %v83 = vld [vmem:[#allocation2] sm:$0x3]
    %v84 = vld [vmem:[#allocation5] sm:$0xff]
    %v85 = vld [vmem:[#allocation5 + $0x8] sm:$0xff]
    %v86 = vld [vmem:[#allocation5 + $0x10] sm:$0xff]
    %v87 = vld [vmem:[#allocation5 + $0x18] sm:$0xff]
    %v88 = vld [vmem:[#allocation7] sm:$0x1]
    %v90 = vlaneseq
    %v91 = vshrl.u32 %v90, 7
    %v92 = vsub.s32 0, %v91
    %v93 = vrot.slane %v88, %v92
    %vm95 = vcmask 261120
    %v97 = vsel %vm95, %v83, 0
    %99 = vmatprep.subr.mxu0 0.0
    %100 = vmatpush1.msra.mxu0 %v84
    %101 = vmatprep.subr.mxu0 0.0
    %102 = vmatpush1.msra.mxu0 %v85
    %103 = vmatprep.subr.mxu0 0.0
    %104 = vmatpush1.msra.mxu0 %v86
    %105 = vmatprep.subr.mxu0 0.0
    %106 = vmatpush1.msra.mxu0 %v87
    %107 = vmatprep.subr.mxu0 0.0
    %108 = vmatpush1.msra.mxu0 0.0
    %109 = vmatprep.subr.mxu0 0.0
    %110 = vmatpush1.msra.mxu0 0.0
    %111 = vmatprep.subr.mxu0 0.0
    %112 = vmatpush1.msra.mxu0 0.0
    %113 = vmatprep.subr.mxu0 0.0
    %114 = vmatpush1.msra.mxu0 0.0
    %115 = vmatprep.subr.mxu0 0.0
    %116 = vmatpush1.msra.mxu0 0.0
    %117 = vmatprep.subr.mxu0 0.0
    %118 = vmatpush1.msra.mxu0 0.0
    %119 = vmatprep.subr.mxu0 0.0
    %120 = vmatpush1.msra.mxu0 0.0
    %121 = vmatprep.subr.mxu0 0.0
    %122 = vmatpush1.msra.mxu0 0.0
    %123 = vmatprep.subr.mxu0 0.0
    %124 = vmatpush1.msra.mxu0 0.0
    %125 = vmatprep.subr.mxu0 0.0
    %126 = vmatpush1.msra.mxu0 0.0
    %127 = vmatprep.subr.mxu0 0.0
    %128 = vmatpush1.msra.mxu0 0.0
    %129 = vmatprep.subr.mxu0 0.0
    %130 = vmatpush1.msra.mxu0 0.0
    %131 = vmatprep.subr.mxu0 0.0
    %132 = vmatpush1.msra.mxu0 0.0
    %133 = vmatprep.subr.mxu0 0.0
    %134 = vmatpush1.msra.mxu0 0.0
    %135 = vmatprep.subr.mxu0 0.0
    %136 = vmatpush1.msra.mxu0 0.0
    %137 = vmatprep.subr.mxu0 0.0
    %138 = vmatpush1.msra.mxu0 0.0
    %139 = vmatprep.subr.mxu0 0.0
    %140 = vmatpush1.msra.mxu0 0.0
    %141 = vmatprep.subr.mxu0 0.0
    %142 = vmatpush1.msra.mxu0 0.0
    %143 = vmatprep.subr.mxu0 0.0
    %144 = vmatpush1.msra.mxu0 0.0
    %145 = vmatprep.subr.mxu0 0.0
    %146 = vmatpush1.msra.mxu0 0.0
    %147 = vmatprep.subr.mxu0 0.0
    %148 = vmatpush1.msra.mxu0 0.0
    %149 = vmatprep.subr.mxu0 0.0
    %150 = vmatpush1.msra.mxu0 0.0
    %151 = vmatprep.subr.mxu0 0.0
    %152 = vmatpush1.msra.mxu0 0.0
    %153 = vmatprep.subr.mxu0 0.0
    %154 = vmatpush1.msra.mxu0 0.0
    %155 = vmatprep.subr.mxu0 0.0
    %156 = vmatpush1.msra.mxu0 0.0
    %157 = vmatprep.subr.mxu0 0.0
    %158 = vmatpush1.msra.mxu0 0.0
    %159 = vmatprep.subr.mxu0 0.0
    %160 = vmatpush1.msra.mxu0 0.0
    %161 = vmatprep.subr.mxu0 0.0
    %162 = vmatpush1.msra.mxu0 0.0
    %163 = vmatprep.mubr.f32.mxu0 0.0
    %164 = vmatmul.mubr.f32.gmra.mrb[0].mxu0 %v97
    %v165 = vpop.f32.mrb[0].mxu0
    %v166 = vadd.f32 %v93, %v165
    %v167 = vpop.f32.mrb[0].mxu0
    %168 = vdwg.mxu0
    %v169 = vmax.f32 %v166, 0.0
    %v170 = vld [vmem:[#allocation8] sm:$0xff]
    %v171 = vld [vmem:[#allocation8 + $0x8] sm:$0xff]
    %v172 = vld [vmem:[#allocation8 + $0x10] sm:$0xff]
    %v173 = vld [vmem:[#allocation8 + $0x18] sm:$0xff]
    %v174 = vld [vmem:[#allocation8 + $0x20] sm:$0xff]
    %v175 = vld [vmem:[#allocation8 + $0x28] sm:$0xff]
    %v176 = vld [vmem:[#allocation8 + $0x30] sm:$0xff]
    %v177 = vld [vmem:[#allocation8 + $0x38] sm:$0xff]
    %v178 = vld [vmem:[#allocation8 + $0x40] sm:$0xff]
    %v179 = vld [vmem:[#allocation8 + $0x48] sm:$0xff]
    %v180 = vld [vmem:[#allocation8 + $0x50] sm:$0xff]
    %v181 = vld [vmem:[#allocation8 + $0x58] sm:$0xff]
    %v182 = vld [vmem:[#allocation8 + $0x60] sm:$0xff]
    %v183 = vld [vmem:[#allocation8 + $0x68] sm:$0xff]
    %v184 = vld [vmem:[#allocation8 + $0x70] sm:$0xff]
    %v185 = vld [vmem:[#allocation8 + $0x78] sm:$0xff]
    %v186 = vld [vmem:[#allocation10] sm:$0x1]
    %v188 = vlaneseq
    %v189 = vshrl.u32 %v188, 7
    %v190 = vsub.s32 0, %v189
    %v191 = vrot.slane %v186, %v190
    %193 = vmatprep.subr.mxu0 0.0
    %194 = vmatpush1.msra.mxu0 %v170
    %195 = vmatprep.subr.mxu0 0.0
    %196 = vmatpush1.msra.mxu0 %v171
    %197 = vmatprep.subr.mxu0 0.0
    %198 = vmatpush1.msra.mxu0 %v172
    %199 = vmatprep.subr.mxu0 0.0
    %200 = vmatpush1.msra.mxu0 %v173
    %201 = vmatprep.subr.mxu0 0.0
    %202 = vmatpush1.msra.mxu0 %v174
    %203 = vmatprep.subr.mxu0 0.0
    %204 = vmatpush1.msra.mxu0 %v175
    %205 = vmatprep.subr.mxu0 0.0
    %206 = vmatpush1.msra.mxu0 %v176
    %207 = vmatprep.subr.mxu0 0.0
    %208 = vmatpush1.msra.mxu0 %v177
    %209 = vmatprep.subr.mxu0 0.0
    %210 = vmatpush1.msra.mxu0 %v178
    %211 = vmatprep.subr.mxu0 0.0
    %212 = vmatpush1.msra.mxu0 %v179
    %213 = vmatprep.subr.mxu0 0.0
    %214 = vmatpush1.msra.mxu0 %v180
    %215 = vmatprep.subr.mxu0 0.0
    %216 = vmatpush1.msra.mxu0 %v181
    %217 = vmatprep.subr.mxu0 0.0
    %218 = vmatpush1.msra.mxu0 %v182
    %219 = vmatprep.subr.mxu0 0.0
    %220 = vmatpush1.msra.mxu0 %v183
    %221 = vmatprep.subr.mxu0 0.0
    %222 = vmatpush1.msra.mxu0 %v184
    %223 = vmatprep.subr.mxu0 0.0
    %224 = vmatpush1.msra.mxu0 %v185
    %225 = vmatprep.subr.mxu0 0.0
    %226 = vmatpush1.msra.mxu0 0.0
    %227 = vmatprep.subr.mxu0 0.0
    %228 = vmatpush1.msra.mxu0 0.0
    %229 = vmatprep.subr.mxu0 0.0
    %230 = vmatpush1.msra.mxu0 0.0
    %231 = vmatprep.subr.mxu0 0.0
    %232 = vmatpush1.msra.mxu0 0.0
    %233 = vmatprep.subr.mxu0 0.0
    %234 = vmatpush1.msra.mxu0 0.0
    %235 = vmatprep.subr.mxu0 0.0
    %236 = vmatpush1.msra.mxu0 0.0
    %237 = vmatprep.subr.mxu0 0.0
    %238 = vmatpush1.msra.mxu0 0.0
    %239 = vmatprep.subr.mxu0 0.0
    %240 = vmatpush1.msra.mxu0 0.0
    %241 = vmatprep.subr.mxu0 0.0
    %242 = vmatpush1.msra.mxu0 0.0
    %243 = vmatprep.subr.mxu0 0.0
    %244 = vmatpush1.msra.mxu0 0.0
    %245 = vmatprep.subr.mxu0 0.0
    %246 = vmatpush1.msra.mxu0 0.0
    %247 = vmatprep.subr.mxu0 0.0
    %248 = vmatpush1.msra.mxu0 0.0
    %249 = vmatprep.subr.mxu0 0.0
    %250 = vmatpush1.msra.mxu0 0.0
    %251 = vmatprep.subr.mxu0 0.0
    %252 = vmatpush1.msra.mxu0 0.0
    %253 = vmatprep.subr.mxu0 0.0
    %254 = vmatpush1.msra.mxu0 0.0
    %255 = vmatprep.subr.mxu0 0.0
    %256 = vmatpush1.msra.mxu0 0.0
    %257 = vmatprep.mubr.f32.mxu0 0.0
    %258 = vmatmul.mubr.f32.gmra.mrb[0].mxu0 %v169
    %v259 = vpop.f32.mrb[0].mxu0
    %v260 = vadd.f32 %v191, %v259
    %v261 = vpop.f32.mrb[0].mxu0
    %262 = vdwg.mxu0
    %v263 = vmax.f32 %v260, 0.0
    %vm264 = vcmask 58368
    %265 = vst.msk [vmem:[#allocation11] sm:$0x3] %vm264, %v263
    // Predicated region
    $region42: #{tpu_custom_call.1} parent=1 // pred_check
      _
    $region43: #{tpu_custom_call.1} parent=1 // pred_check_branch
      %267 = sbr.rel (0) target = $region45
    $region44: #{tpu_custom_call.1} parent=1 // pred_region
      %s269 = ssub.s32 32, 32
      %270 = vsyncadd [#allocation4], %s269
      %s272 = sshll.u32 [#allocation11], 4
      %s273 = int_to_ptr.vmem [resolvable:$true] %s272
      %275 = dma.vmem_to_hbm [thread:$0]  %s273, 32, %s5, [#allocation4]
    $region45: #{tpu_custom_call.1} parent=1 // pred_fallthru
      _
    // Predicated region
    $region46: #{tpu_custom_call.1} parent=1 // pred_check
      _
    $region47: #{tpu_custom_call.1} parent=1 // pred_check_branch
      %277 = sbr.rel (0) target = $region49
    $region48: #{tpu_custom_call.1} parent=1 // pred_region
      %278 = dma.done [#allocation4], 32
    $region49: #{tpu_custom_call.1} parent=1 // pred_fallthru
      _
    %279 = vsyncpa [#allocation3], 1
    %280 = vsyncpa [#allocation6], 1
    %281 = vsyncpa [#allocation9], 1
    %282 = vsyncpa [#allocation4], 1

</llo_original>
